<compile_context>
chip_gen: v6e
topology: v6e:2x2x1
jax: 0.10.0
libtpu: 0.0.40
codegen_flags: <defaults>
</compile_context>

<pallas_src>
import functools

import jax
import jax.numpy as jnp
from jax.experimental import pallas as pl
from jax.experimental.pallas import tpu as pltpu


def _round_up(x, m):
    return (x + m - 1) // m * m


def _ce2d_kernel(logits_ref, tgt_ref, psum_ref, pcnt_ref, *,
                 hw, ignore_index, ragged):
    t = pl.program_id(1)
    num_classes, tile = logits_ref.shape

    # Full-occupancy (C, tile) block ops.  Upcast to f32 in-kernel so bf16
    # logits can be streamed straight from the model (no wrapper promotion).
    x = logits_ref[...].astype(jnp.float32)                   # (C, tile)
    tgt = tgt_ref[...]                                         # (1, tile) int32

    m = jnp.max(x, axis=0, keepdims=True)                      # (1, tile)  XLU
    z = x - m                                                   # (C, tile)  VPU
    sum_exp = jnp.sum(jnp.exp(z), axis=0, keepdims=True)        # EUP + XLU

    cls = jax.lax.broadcasted_iota(jnp.int32, (num_classes, tile), 0)
    # Select-then-reduce (keep it a select: ragged pad lanes may hold garbage
    # and a multiply-by-mask would propagate NaN/Inf).
    picked_z = jnp.sum(jnp.where(cls == tgt, z, 0.0), axis=0, keepdims=True)

    # per-pixel NLL = logsumexp(x) - x[target]   (log-probs never materialized)
    nll = jnp.log(sum_exp) - picked_z                           # (1, tile) f32

    valid = tgt != ignore_index
    if ragged:  # trace-time check: only emitted when hw % tile_hw != 0
        lane = jax.lax.broadcasted_iota(jnp.int32, (1, tile), 1)
        valid = valid & ((t * tile + lane) < hw)

    nll_sum = jnp.sum(jnp.where(valid, nll, 0.0))               # scalar (XLU)
    cnt = jnp.sum(valid.astype(jnp.float32))                    # scalar (XLU)

    # Lane-dense (1, 128) partial-output blocks (scalar broadcast); the tiny
    # final reduce happens in the wrapper.
    psum_ref[...] = jnp.full(psum_ref.shape, nll_sum, dtype=jnp.float32)
    pcnt_ref[...] = jnp.full(pcnt_ref.shape, cnt, dtype=jnp.float32)


def _pick_tile_hw(hw, num_classes, logits_itemsize,
                  target_block_bytes=2 << 20, vmem_budget_bytes=24 << 20):
    """Largest lane tile (multiple of 128) such that the logits block is
    ~target_block_bytes and the double-buffered inputs plus a few f32 (C, tile)
    intermediates fit a conservative, v7x-safe VMEM budget."""
    hw_pad = _round_up(hw, 128)
    # ~2 MiB logits block amortizes the ~0.35 us per-grid-step overhead
    # (>=512-lane blocks already reach ~85% of HBM roofline).
    tile = (target_block_bytes // max(1, num_classes * logits_itemsize)) // 128 * 128
    # Rough VMEM model: 2x (logits + targets) double-buffered + ~4 f32 (C,tile)
    # intermediates (z, exp(z), iota, select) must fit the scoped budget.
    per_lane = 2 * (num_classes * logits_itemsize + 4) + 4 * num_classes * 4
    tile = min(tile, (vmem_budget_bytes // per_lane) // 128 * 128)
    return max(128, min(tile, hw_pad))


def cross_entropy_loss_2d(outputs, targets, *, ignore_index=-100, tile_hw=None):
    """outputs: (N, C, H, W); targets: (N, H, W) int. Returns scalar mean loss."""
    N, C, H, W = outputs.shape
    hw = H * W

    # Free reshapes only -- no transpose, no dtype copy of the logits.
    logits = outputs.reshape(N, C, hw)
    tgts = targets.reshape(N, 1, hw).astype(jnp.int32)

    if tile_hw is None:
        tile_hw = _pick_tile_hw(hw, C, jnp.dtype(logits.dtype).itemsize)
    else:
        tile_hw = max(128, _round_up(min(tile_hw, _round_up(hw, 128)), 128))

    num_tiles = pl.cdiv(hw, tile_hw)
    ragged = (hw % tile_hw) != 0

    kernel = functools.partial(_ce2d_kernel, hw=hw,
                               ignore_index=ignore_index, ragged=ragged)

    psum, pcnt = pl.pallas_call(
        kernel,
        out_shape=(jax.ShapeDtypeStruct((N, num_tiles, 1, 128), jnp.float32),
                   jax.ShapeDtypeStruct((N, num_tiles, 1, 128), jnp.float32)),
        grid_spec=pltpu.PrefetchScalarGridSpec(
            num_scalar_prefetch=0,
            grid=(N, num_tiles),
            in_specs=[
                # leading N dim squeezed -> kernel sees (C, tile_hw), lane-dense
                pl.BlockSpec((None, C, tile_hw), lambda n, t: (n, 0, t)),
                pl.BlockSpec((None, 1, tile_hw), lambda n, t: (n, 0, t)),
            ],
            out_specs=[
                pl.BlockSpec((1, 1, 1, 128), lambda n, t: (n, t, 0, 0)),
                pl.BlockSpec((1, 1, 1, 128), lambda n, t: (n, t, 0, 0)),
            ],
        ),
        compiler_params=pltpu.CompilerParams(
            # No resident accumulator -> fully parallel grid (2x on v7x's
            # two TensorCores, neutral on v5e/v6e).
            dimension_semantics=("parallel", "parallel"),
            vmem_limit_bytes=32 << 20,
        ),
    )(logits, tgts)

    # Tiny final reduce in the wrapper; mean over non-ignored pixels
    # (NLLLoss2d default, weight=None).
    total_nll = jnp.sum(psum[:, :, 0, 0])
    valid_cnt = jnp.sum(pcnt[:, :, 0, 0])
    return total_nll / valid_cnt


if __name__ == "__main__":
    key = jax.random.PRNGKey(0)
    k1, k2 = jax.random.split(key)

    N, C, H, W = 2, 4, 16, 16
    outputs = jax.random.normal(k1, (N, C, H, W), dtype=jnp.float32)
    targets = jax.random.randint(k2, (N, H, W), 0, C, dtype=jnp.int32)

    loss = cross_entropy_loss_2d(outputs, targets)
    loss = jax.block_until_ready(loss)

    # Pure-JAX reference (log_softmax over dim=1 + mean NLL; no ignored pixels).
    logp_ref = jax.nn.log_softmax(outputs, axis=1)              # (N, C, H, W)
    picked = jnp.take_along_axis(logp_ref, targets[:, None, :, :], axis=1)
    loss_ref = -jnp.mean(picked)
    assert jnp.allclose(loss, loss_ref, atol=1e-5, rtol=1e-5), (loss, loss_ref)

    print("KERNEL_OK")
</pallas_src>

<mosaic_0001>
module attributes {stable_mosaic.version = 11 : i64} {
  func.func @_ce2d_kernel(%arg0: i32, %arg1: i32, %arg2: memref<1x4x256xf32, #tpu.memory_space<vmem>>, %arg3: memref<1x1x256xi32, #tpu.memory_space<vmem>>, %arg4: memref<1x1x1x128xf32, #tpu.memory_space<vmem>>, %arg5: memref<1x1x1x128xf32, #tpu.memory_space<vmem>>) attributes {dimension_semantics = [#tpu.dimension_semantics<parallel>, #tpu.dimension_semantics<parallel>], iteration_bounds = array<i64: 2, 1>, scalar_prefetch = 0 : i64, scratch_operands = 0 : i64, tpu.core_type = #tpu.core_type<tc>, window_params = [{transform_indices = @transform_0, window_bounds = array<i64: 1, 4, 256>}, {transform_indices = @transform_1, window_bounds = array<i64: 1, 1, 256>}, {transform_indices = @transform_2, window_bounds = array<i64: 1, 1, 1, 128>}, {transform_indices = @transform_3, window_bounds = array<i64: 1, 1, 1, 128>}]} {
    %c0 = arith.constant 0 : index
    %c0_0 = arith.constant 0 : index
    %c0_1 = arith.constant 0 : index
    %0 = vector.load %arg2[%c0, %c0_0, %c0_1] : memref<1x4x256xf32, #tpu.memory_space<vmem>>, vector<1x4x256xf32>
    %1 = vector.shape_cast %0 : vector<1x4x256xf32> to vector<4x256xf32>
    %c0_2 = arith.constant 0 : index
    %c0_3 = arith.constant 0 : index
    %c0_4 = arith.constant 0 : index
    %2 = vector.load %arg3[%c0_2, %c0_3, %c0_4] : memref<1x1x256xi32, #tpu.memory_space<vmem>>, vector<1x1x256xi32>
    %3 = vector.shape_cast %2 : vector<1x1x256xi32> to vector<1x256xi32>
    %cst = arith.constant dense<0xFF800000> : vector<256xf32>
    %4 = vector.multi_reduction <maximumf>, %1, %cst [0] : vector<4x256xf32> to vector<256xf32>
    %5 = vector.shape_cast %4 : vector<256xf32> to vector<1x256xf32>
    %6 = vector.broadcast %5 : vector<1x256xf32> to vector<4x256xf32>
    %7 = arith.subf %1, %6 : vector<4x256xf32>
    %8 = math.exp %7 : vector<4x256xf32>
    %cst_5 = arith.constant dense<0.000000e+00> : vector<256xf32>
    %9 = vector.multi_reduction <add>, %8, %cst_5 [0] : vector<4x256xf32> to vector<256xf32>
    %10 = vector.shape_cast %9 : vector<256xf32> to vector<1x256xf32>
    %11 = tpu.iota {dimensions = array<i32: 0>} : vector<4x256xi32>
    %12 = vector.broadcast %3 : vector<1x256xi32> to vector<4x256xi32>
    %13 = arith.cmpi eq, %11, %12 : vector<4x256xi32>
    %cst_6 = arith.constant 0.000000e+00 : f32
    %14 = vector.broadcast %cst_6 : f32 to vector<4x256xf32>
    %15 = arith.select %13, %7, %14 : vector<4x256xi1>, vector<4x256xf32>
    %cst_7 = arith.constant dense<0.000000e+00> : vector<256xf32>
    %16 = vector.multi_reduction <add>, %15, %cst_7 [0] : vector<4x256xf32> to vector<256xf32>
    %17 = vector.shape_cast %16 : vector<256xf32> to vector<1x256xf32>
    %18 = math.log %10 : vector<1x256xf32>
    %19 = arith.subf %18, %17 : vector<1x256xf32>
    %c-100_i32 = arith.constant -100 : i32
    %20 = vector.broadcast %c-100_i32 : i32 to vector<1x256xi32>
    %21 = arith.cmpi ne, %3, %20 : vector<1x256xi32>
    %cst_8 = arith.constant 0.000000e+00 : f32
    %22 = vector.broadcast %cst_8 : f32 to vector<1x256xf32>
    %23 = arith.select %21, %19, %22 : vector<1x256xi1>, vector<1x256xf32>
    %24 = vector.shape_cast %23 : vector<1x256xf32> to vector<1x1x256xf32>
    %cst_9 = arith.constant dense<0.000000e+00> : vector<1xf32>
    %25 = vector.multi_reduction <add>, %24, %cst_9 [1, 2] : vector<1x1x256xf32> to vector<1xf32>
    %26 = vector.shape_cast %25 : vector<1xf32> to vector<1x1x1xf32>
    %27 = vector.extract %26[0, 0, 0] : f32 from vector<1x1x1xf32>
    %28 = arith.extui %21 : vector<1x256xi1> to vector<1x256xi32>
    %29 = arith.sitofp %28 : vector<1x256xi32> to vector<1x256xf32>
    %30 = vector.shape_cast %29 : vector<1x256xf32> to vector<1x1x256xf32>
    %cst_10 = arith.constant dense<0.000000e+00> : vector<1xf32>
    %31 = vector.multi_reduction <add>, %30, %cst_10 [1, 2] : vector<1x1x256xf32> to vector<1xf32>
    %32 = vector.shape_cast %31 : vector<1xf32> to vector<1x1x1xf32>
    %33 = vector.extract %32[0, 0, 0] : f32 from vector<1x1x1xf32>
    %34 = vector.broadcast %27 : f32 to vector<1x1x1x128xf32>
    %c0_11 = arith.constant 0 : index
    %c0_12 = arith.constant 0 : index
    %c0_13 = arith.constant 0 : index
    %c0_14 = arith.constant 0 : index
    %35 = vector.load %arg4[%c0_11, %c0_12, %c0_13, %c0_14] : memref<1x1x1x128xf32, #tpu.memory_space<vmem>>, vector<1x1x1x128xf32>
    tpu.vector_store %arg4[%c0_11, %c0_12, %c0_13, %c0_14], %34 {strides = array<i32>} : memref<1x1x1x128xf32, #tpu.memory_space<vmem>>, vector<1x1x1x128xf32>,
    %36 = vector.broadcast %33 : f32 to vector<1x1x1x128xf32>
    %c0_15 = arith.constant 0 : index
    %c0_16 = arith.constant 0 : index
    %c0_17 = arith.constant 0 : index
    %c0_18 = arith.constant 0 : index
    %37 = vector.load %arg5[%c0_15, %c0_16, %c0_17, %c0_18] : memref<1x1x1x128xf32, #tpu.memory_space<vmem>>, vector<1x1x1x128xf32>
    tpu.vector_store %arg5[%c0_15, %c0_16, %c0_17, %c0_18], %36 {strides = array<i32>} : memref<1x1x1x128xf32, #tpu.memory_space<vmem>>, vector<1x1x1x128xf32>,
    return
  }
  func.func @transform_0(%arg0: i32, %arg1: i32) -> (i32, i32, i32) {
    %c0_i32 = arith.constant 0 : i32
    %c0_i32_0 = arith.constant 0 : i32
    return %arg0, %c0_i32, %arg1 : i32, i32, i32
  }
  func.func @transform_1(%arg0: i32, %arg1: i32) -> (i32, i32, i32) {
    %c0_i32 = arith.constant 0 : i32
    %c0_i32_0 = arith.constant 0 : i32
    return %arg0, %c0_i32, %arg1 : i32, i32, i32
  }
  func.func @transform_2(%arg0: i32, %arg1: i32) -> (i32, i32, i32, i32) {
    %c0_i32 = arith.constant 0 : i32
    %c0_i32_0 = arith.constant 0 : i32
    %c0_i32_1 = arith.constant 0 : i32
    return %arg0, %arg1, %c0_i32, %c0_i32_0 : i32, i32, i32, i32
  }
  func.func @transform_3(%arg0: i32, %arg1: i32) -> (i32, i32, i32, i32) {
    %c0_i32 = arith.constant 0 : i32
    %c0_i32_0 = arith.constant 0 : i32
    %c0_i32_1 = arith.constant 0 : i32
    return %arg0, %arg1, %c0_i32, %c0_i32_0 : i32, i32, i32, i32
  }
}

</mosaic_0001>

<llo_original>
// kernel: tpu_custom_call.1
$region0: #{tpu_custom_call.1}
  #allocation0 [shape = 'u32[]', space=smem, size = 0x4, offset = 0x4, fixed_abs, tag = 'smem constant byte address 0x4 - core index']
  #allocation1 [shape = 'u32[144,128]{1,0:T(1,128)}', space=vmem, size = 0x12000, scoped, tag = 'internal scratch']
  %s0 = inlined_call_operand.hbm [shape: f32[2,4,256], index: 0, kind: input, shape index: {}]
  %s1 = inlined_call_operand.hbm [shape: s32[2,1,256], index: 1, kind: input, shape index: {}]
  %s2 = inlined_call_operand.hbm [shape: f32[2,1,1,128], index: 2, kind: output, shape index: {0}]
  %s3 = inlined_call_operand.hbm [shape: f32[2,1,1,128], index: 3, kind: output, shape index: {1}]
  %4 = xla_tuple %s2, %s3
  %s5 = sld [smem:[#allocation0]]
  $region57: #{tpu_custom_call.1} parent=0
    _
  %s7 = ssub.s32 1, %s5
  %s8 = scalar_select 0, %s7, %s5
  $region1: #{tpu_custom_call.1} parent=0
    #allocation2 [shape = 'u8[8192]{0}', space=vmem, size = 0x2000, scoped, tag = 'input window, operand 0']
    #allocation3 [shape = 's32[2]{0}', space=sflag, size = 0x8, scoped, tag = 'scoped memory for tpu_custom_call.1']
    #allocation4 [shape = 's32[2]{0}', space=sflag, size = 0x8, scoped, tag = 'scoped memory for tpu_custom_call.1']
    #allocation5 [shape = 'u8[2048]{0}', space=vmem, size = 0x800, scoped, tag = 'input window, operand 1']
    #allocation6 [shape = 's32[2]{0}', space=sflag, size = 0x8, scoped, tag = 'scoped memory for tpu_custom_call.1']
    #allocation7 [shape = 'u8[1024]{0}', space=vmem, size = 0x400, scoped, tag = 'output window, operand 0']
    #allocation8 [shape = 'u8[1024]{0}', space=vmem, size = 0x400, scoped, tag = 'output window, operand 1']
    #allocation9 [shape = 's32[2]{0}', space=sflag, size = 0x8, scoped, tag = 'scoped memory for tpu_custom_call.1']
    %9 = vsyncpa [#allocation3], 0
    %s10 = scalar_lea.sflag [#allocation3], 1
    %11 = vsyncpa %s10, 0
    %12 = vsyncpa [#allocation6], 0
    %s13 = scalar_lea.sflag [#allocation6], 1
    %14 = vsyncpa %s13, 0
    %15 = vsyncpa [#allocation4], 0
    %s16 = scalar_lea.sflag [#allocation4], 1
    %17 = vsyncpa %s16, 0
    %18 = vsyncpa [#allocation9], 0
    %s19 = scalar_lea.sflag [#allocation9], 1
    %20 = vsyncpa %s19, 0
    loop: start=0, step=1, limit=4
    $region2: #{tpu_custom_call.1} parent=1 // loop_pre_header
      _
    $region3: #{tpu_custom_call.1} parent=1 // loop_header
      %s22 = sphi 0, %s26
      %p23 = scmp.ge.s32.totalorder %s22, 4
      %s29 = sphi 0, %s41
      %s30 = sphi 0, %s37
      %s31 = sphi 0, %s29
      %s32 = sphi 0, %s30
      %s33 = sphi 0, %s31
      %s34 = sphi 0, %s32
      %s46 = sphi 0, %s48
      %s49 = sphi 0, %s46
      %s50 = sphi 0, %s49
      %s66 = sphi 0, %s50
      %s74 = sphi 0, %s76
      %s77 = sphi 0, %s74
      %s78 = sphi 0, %s77
      %s94 = sphi 0, %s78
      %s102 = sphi 0, %s104
      %s105 = sphi 0, %s102
      %s106 = sphi 0, %s105
      %s122 = sphi 0, %s106
      %s130 = sphi 0, %s132
      %s133 = sphi 0, %s130
      %s134 = sphi 0, %s133
      %s150 = sphi 0, %s134
    $region4: #{tpu_custom_call.1} parent=1 // loop_header_branch
      %25 = sbr.rel (%p23) target = $region8
    $region5: #{tpu_custom_call.1} parent=1 // loop_body
      %s27 = ssub.s32 %s22, 1
      %s28 = ssub.s32 %s22, 2
      %s35 = sadd.s32 1, %s30
      %p36 = scmp.ge.s32.totalorder %s35, 1
      %s37 = scalar_select %p36, 0, %s35
      %s38 = sadd.s32 1, %s29
      %s39 = scalar_select %p36, %s38, %s29
      %p40 = scmp.ge.s32.totalorder %s39, 2
      %s41 = scalar_select %p40, 0, %s39
      %s42 = ssub.s32 %s29, %s41
      %s43 = ssub.s32 %s30, %s37
      %s44 = sor.u32 %s42, %s43
      %p45 = scmp.eq.s32.totalorder %s44, 0
      %s47 = sadd.s32 %s46, 1
      %s48 = scalar_select %p45, %s46, %s47
      %p51 = pneg %p45
      %p52 = scmp.eq.s32.totalorder %s22, 1
      %p53 = por %p51, %p52
      %p54 = scmp.ne.s32.totalorder %s46, %s49
      %p55 = scmp.eq.s32.totalorder %s22, 0
      %p56 = por %p54, %p55
      %p57 = scmp.ne.s32.totalorder %s46, %s49
      %p58 = scmp.eq.s32.totalorder %s27, 1
      %p59 = por %p57, %p58
      %p60 = scmp.ne.s32.totalorder %s49, %s50
      %p61 = scmp.eq.s32.totalorder %s27, 0
      %p62 = por %p60, %p61
      %p63 = scmp.ne.s32.totalorder %s49, %s50
      %p64 = scmp.eq.s32.totalorder %s28, 1
      %p65 = por %p63, %p64
      %p67 = scmp.ne.s32.totalorder %s50, %s66
      %p68 = scmp.eq.s32.totalorder %s28, 0
      %p69 = por %p67, %p68
      %s70 = ssub.s32 %s29, %s41
      %s71 = ssub.s32 %s30, %s37
      %s72 = sor.u32 %s70, %s71
      %p73 = scmp.eq.s32.totalorder %s72, 0
      %s75 = sadd.s32 %s74, 1
      %s76 = scalar_select %p73, %s74, %s75
      %p79 = pneg %p73
      %p80 = scmp.eq.s32.totalorder %s22, 1
      %p81 = por %p79, %p80
      %p82 = scmp.ne.s32.totalorder %s74, %s77
      %p83 = scmp.eq.s32.totalorder %s22, 0
      %p84 = por %p82, %p83
      %p85 = scmp.ne.s32.totalorder %s74, %s77
      %p86 = scmp.eq.s32.totalorder %s27, 1
      %p87 = por %p85, %p86
      %p88 = scmp.ne.s32.totalorder %s77, %s78
      %p89 = scmp.eq.s32.totalorder %s27, 0
      %p90 = por %p88, %p89
      %p91 = scmp.ne.s32.totalorder %s77, %s78
      %p92 = scmp.eq.s32.totalorder %s28, 1
      %p93 = por %p91, %p92
      %p95 = scmp.ne.s32.totalorder %s78, %s94
      %p96 = scmp.eq.s32.totalorder %s28, 0
      %p97 = por %p95, %p96
      %s98 = ssub.s32 %s29, %s41
      %s99 = ssub.s32 %s30, %s37
      %s100 = sor.u32 %s98, %s99
      %p101 = scmp.eq.s32.totalorder %s100, 0
      %s103 = sadd.s32 %s102, 1
      %s104 = scalar_select %p101, %s102, %s103
      %p107 = pneg %p101
      %p108 = scmp.eq.s32.totalorder %s22, 1
      %p109 = por %p107, %p108
      %p110 = scmp.ne.s32.totalorder %s102, %s105
      %p111 = scmp.eq.s32.totalorder %s22, 0
      %p112 = por %p110, %p111
      %p113 = scmp.ne.s32.totalorder %s102, %s105
      %p114 = scmp.eq.s32.totalorder %s27, 1
      %p115 = por %p113, %p114
      %p116 = scmp.ne.s32.totalorder %s105, %s106
      %p117 = scmp.eq.s32.totalorder %s27, 0
      %p118 = por %p116, %p117
      %p119 = scmp.ne.s32.totalorder %s105, %s106
      %p120 = scmp.eq.s32.totalorder %s28, 1
      %p121 = por %p119, %p120
      %p123 = scmp.ne.s32.totalorder %s106, %s122
      %p124 = scmp.eq.s32.totalorder %s28, 0
      %p125 = por %p123, %p124
      %s126 = ssub.s32 %s29, %s41
      %s127 = ssub.s32 %s30, %s37
      %s128 = sor.u32 %s126, %s127
      %p129 = scmp.eq.s32.totalorder %s128, 0
      %s131 = sadd.s32 %s130, 1
      %s132 = scalar_select %p129, %s130, %s131
      %p135 = pneg %p129
      %p136 = scmp.eq.s32.totalorder %s22, 1
      %p137 = por %p135, %p136
      %p138 = scmp.ne.s32.totalorder %s130, %s133
      %p139 = scmp.eq.s32.totalorder %s22, 0
      %p140 = por %p138, %p139
      %p141 = scmp.ne.s32.totalorder %s130, %s133
      %p142 = scmp.eq.s32.totalorder %s27, 1
      %p143 = por %p141, %p142
      %p144 = scmp.ne.s32.totalorder %s133, %s134
      %p145 = scmp.eq.s32.totalorder %s27, 0
      %p146 = por %p144, %p145
      %p147 = scmp.ne.s32.totalorder %s133, %s134
      %p148 = scmp.eq.s32.totalorder %s28, 1
      %p149 = por %p147, %p148
      %p151 = scmp.ne.s32.totalorder %s134, %s150
      %p152 = scmp.eq.s32.totalorder %s28, 0
      %p153 = por %p151, %p152
      %p154 = scmp.le.s32.totalorder 1, %s22
      %p155 = scmp.lt.s32.totalorder %s22, 3
      %p156 = pnand %p154, %p155
      %p157 = pneg %p156
      // Predicated region
      $region9: #{tpu_custom_call.1} parent=5 // pred_check
        _
      $region10: #{tpu_custom_call.1} parent=5 // pred_check_branch
        %159 = sbr.rel (%p156) target = $region12
      $region11: #{tpu_custom_call.1} parent=5 // pred_region
        %s160 = ssub.s32 %s22, 1
      $region12: #{tpu_custom_call.1} parent=5 // pred_fallthru
        _
      %p161 = scmp.lt.s32.totalorder %s22, 2
      // Predicated region
      $region13: #{tpu_custom_call.1} parent=5 // pred_check
        %p162 = pneg %p161
      $region14: #{tpu_custom_call.1} parent=5 // pred_check_branch
        %164 = sbr.rel (%p162) target = $region16
      $region15: #{tpu_custom_call.1} parent=5 // pred_region
        // Predicated region
        $region17: #{tpu_custom_call.1} parent=15 // pred_check
          %p165 = pneg %p56
        $region18: #{tpu_custom_call.1} parent=15 // pred_check_branch
          %167 = sbr.rel (%p165) target = $region20
        $region19: #{tpu_custom_call.1} parent=15 // pred_region
          %s168 = sand.u32 %s46, 1
          %s169 = scalar_lea.sflag [#allocation3], %s168
          %s170 = sand.u32 %s46, 1
          %s171 = smul.addr %s170, 8
          %s172 = scalar_lea.vmem [#allocation2], %s171
          %s173 = smul.u32 2, %s30
          %s175 = ssub.s32 128, 128
          %176 = vsyncadd %s169, %s175
          %s177 = smul.addr %s29, 2
          %s178 = sadd.s32 %s173, %s177
          %s179 = smul.addr %s178, 64
          %s180 = scalar_lea.hbm %s0, %s179
          %s182 = sshll.u32 %s172, 4
          %s183 = int_to_ptr.vmem [resolvable:$true] %s182
          %185 = dma.hbm_to_vmem [thread:$0]  %s180, 128, %s183, %s169
        $region20: #{tpu_custom_call.1} parent=15 // pred_fallthru
          _
        // Predicated region
        $region21: #{tpu_custom_call.1} parent=15 // pred_check
          %p186 = pneg %p84
        $region22: #{tpu_custom_call.1} parent=15 // pred_check_branch
          %188 = sbr.rel (%p186) target = $region24
        $region23: #{tpu_custom_call.1} parent=15 // pred_region
          %s189 = sand.u32 %s74, 1
          %s190 = scalar_lea.sflag [#allocation6], %s189
          %s191 = sand.u32 %s74, 1
          %s192 = smul.addr %s191, 2
          %s193 = scalar_lea.vmem [#allocation5], %s192
          %s194 = smul.u32 2, %s30
          %s196 = ssub.s32 32, 32
          %197 = vsyncadd %s190, %s196
          %s198 = smul.addr %s29, 2
          %s199 = sadd.s32 %s194, %s198
          %s200 = smul.addr %s199, 16
          %s201 = scalar_lea.hbm %s1, %s200
          %s203 = sshll.u32 %s193, 4
          %s204 = int_to_ptr.vmem [resolvable:$true] %s203
          %206 = dma.hbm_to_vmem [thread:$0]  %s201, 32, %s204, %s190
        $region24: #{tpu_custom_call.1} parent=15 // pred_fallthru
          _
      $region16: #{tpu_custom_call.1} parent=5 // pred_fallthru
        _
      %p207 = scmp.le.s32.totalorder 1, %s22
      %p208 = scmp.lt.s32.totalorder %s22, 3
      %p209 = pnand %p207, %p208
      %p210 = pneg %p209
      // Predicated region
      $region25: #{tpu_custom_call.1} parent=5 // pred_check
        _
      $region26: #{tpu_custom_call.1} parent=5 // pred_check_branch
        %212 = sbr.rel (%p209) target = $region28
      $region27: #{tpu_custom_call.1} parent=5 // pred_region
        %s213 = ssub.s32 %s22, 1
        %s214 = sand.u32 %s49, 1
        %s215 = scalar_lea.sflag [#allocation3], %s214
        %s216 = sand.u32 %s49, 1
        %s217 = smul.addr %s216, 8
        %s218 = scalar_lea.vmem [#allocation2], %s217
        // Predicated region
        $region29: #{tpu_custom_call.1} parent=27 // pred_check
          %p219 = pneg %p62
        $region30: #{tpu_custom_call.1} parent=27 // pred_check_branch
          %221 = sbr.rel (%p219) target = $region32
        $region31: #{tpu_custom_call.1} parent=27 // pred_region
          %222 = dma.done %s215, 128
        $region32: #{tpu_custom_call.1} parent=27 // pred_fallthru
          _
        %s223 = sand.u32 %s77, 1
        %s224 = scalar_lea.sflag [#allocation6], %s223
        %s225 = sand.u32 %s77, 1
        %s226 = smul.addr %s225, 2
        %s227 = scalar_lea.vmem [#allocation5], %s226
        // Predicated region
        $region33: #{tpu_custom_call.1} parent=27 // pred_check
          %p228 = pneg %p90
        $region34: #{tpu_custom_call.1} parent=27 // pred_check_branch
          %230 = sbr.rel (%p228) target = $region36
        $region35: #{tpu_custom_call.1} parent=27 // pred_region
          %231 = dma.done %s224, 32
        $region36: #{tpu_custom_call.1} parent=27 // pred_fallthru
          _
        %s232 = sand.u32 %s49, 1
        %s233 = scalar_lea.sflag [#allocation3], %s232
        %s234 = sand.u32 %s49, 1
        %s235 = smul.addr %s234, 8
        %s236 = scalar_lea.vmem [#allocation2], %s235
        %p237 = pneg %p62
        %p238 = pneg %p59
        %s239 = sand.u32 %s77, 1
        %s240 = scalar_lea.sflag [#allocation6], %s239
        %s241 = sand.u32 %s77, 1
        %s242 = smul.addr %s241, 2
        %s243 = scalar_lea.vmem [#allocation5], %s242
        %p244 = pneg %p90
        %p245 = pneg %p87
        %p246 = pneg %p118
        %p247 = pneg %p115
        %s248 = sand.u32 %s105, 1
        %s249 = scalar_lea.sflag [#allocation4], %s248
        %s250 = sand.u32 %s105, 1
        %s251 = scalar_lea.vmem [#allocation7], %s250
        %p252 = pneg %p146
        %p253 = pneg %p143
        %s254 = sand.u32 %s133, 1
        %s255 = scalar_lea.sflag [#allocation9], %s254
        %s256 = sand.u32 %s133, 1
        %s257 = scalar_lea.vmem [#allocation8], %s256
        %s258 = smul.u32 2, %s32
        %s259 = smul.u32 2, %s32
        %v260 = vld [vmem:[%s218] sm:$0xff]
        %v261 = vld [vmem:[%s227] sm:$0x3]
        %v263 = vcombine.high %v260, %v260
        %vm265 = vcmask 1043456
        %v266 = vsel %vm265, %v260, -inf
        %v267 = vrot.slane %v266, 4
        %v268 = vmax.f32 %v266, %v267
        %v269 = vrot.slane %v268, 2
        %v270 = vmax.f32 %v268, %v269
        %v271 = vrot.slane %v270, 1
        %v272 = vmax.f32 %v270, %v271
        %v273 = vsel %vm265, %v263, -inf
        %v274 = vrot.slane %v273, 4
        %v275 = vmax.f32 %v273, %v274
        %v276 = vrot.slane %v275, 2
        %v277 = vmax.f32 %v275, %v276
        %v278 = vrot.slane %v277, 1
        %v279 = vmax.f32 %v277, %v278
        %v282 = vcombine.low %v272, %v279
        %v284 = vsub.f32 %v260, %v282
        %v285 = vmul.f32 %v284, 1.442695
        %v286 = vpow.pop %v285
        %v288 = vcombine.high %v286, %v286
        %v290 = vsel %vm265, %v286, 0.0
        %v291 = vrot.slane %v290, 4
        %v292 = vadd.f32 %v290, %v291
        %v293 = vrot.slane %v292, 2
        %v294 = vadd.f32 %v292, %v293
        %v295 = vrot.slane %v294, 1
        %v296 = vadd.f32 %v294, %v295
        %v297 = vsel %vm265, %v288, 0.0
        %v298 = vrot.slane %v297, 4
        %v299 = vadd.f32 %v297, %v298
        %v300 = vrot.slane %v299, 2
        %v301 = vadd.f32 %v299, %v300
        %v302 = vrot.slane %v301, 1
        %v303 = vadd.f32 %v301, %v302
        %v304 = vlaneseq
        %v305 = vshrl.u32 %v304, 7
        %v306 = vlaneseq
        %v307 = vshrl.u32 %v306, 7
        %v308 = vsub.s32 0, %v307
        %v309 = vrot.slane %v261, %v308
        %v310 = vlaneseq
        %v311 = vshrl.u32 %v310, 7
        %v312 = vsub.s32 1, %v311
        %v313 = vrot.slane %v261, %v312
        %vm314 = vcmp.eq.s32.totalorder %v305, %v309
        %vm315 = vcmp.eq.s32.totalorder %v305, %v313
        %v317 = vcombine.high %v284, %v284
        %v319 = vsel %vm314, %v284, 0.0
        %v320 = vsel %vm315, %v317, 0.0
        %v321 = vsel %vm265, %v319, 0.0
        %v322 = vrot.slane %v321, 4
        %v323 = vadd.f32 %v321, %v322
        %v324 = vrot.slane %v323, 2
        %v325 = vadd.f32 %v323, %v324
        %v326 = vrot.slane %v325, 1
        %v327 = vadd.f32 %v325, %v326
        %v328 = vsel %vm265, %v320, 0.0
        %v329 = vrot.slane %v328, 4
        %v330 = vadd.f32 %v328, %v329
        %v331 = vrot.slane %v330, 2
        %v332 = vadd.f32 %v330, %v331
        %v333 = vrot.slane %v332, 1
        %v334 = vadd.f32 %v332, %v333
        %v335 = vlog2.pop %v296
        %v336 = vmul.f32 %v335, 0.6931472
        %v337 = vlog2.pop %v303
        %v338 = vmul.f32 %v337, 0.6931472
        %v339 = vsub.f32 %v336, %v327
        %v340 = vsub.f32 %v338, %v334
        %vm341 = vcmp.ne.s32.totalorder %v261, 4294967196
        %v344 = vcombine.low %v339, %v340
        %v346 = vunpack.c.l.s4 1966171168
        %v347 = vunpack.c.0.s8 %v346
        %v348 = vlaneseq
        %v349 = vshrl.u32 %v348, 7
        %v350 = vsub.s32 %v347, %v349
        %v351 = vrot.slane %v344, %v350
        %v353 = vunpack.c.l.s4 1966171168
        %v354 = vunpack.c.0.s8 %v353
        %v355 = vlaneseq
        %v356 = vshrl.u32 %v355, 7
        %v357 = vsub.s32 %v354, %v356
        %v358 = vrot.slane %v351, %v357
        %v360 = vsel %vm341, %v358, 0.0
        %v362 = vlaneseq
        %v363 = vshrl.u32 %v362, 7
        %v364 = vsub.s32 0, %v363
        %v365 = vrot.slane %v360, %v364
        %v366 = vlaneseq
        %v367 = vshrl.u32 %v366, 7
        %v368 = vsub.s32 1, %v367
        %v369 = vrot.slane %v360, %v368
        %vm372 = vcmask 1040384
        %v373 = vsel %vm372, %v365, 0.0
        %v374 = vsel %vm372, %v369, 0.0
        %v375 = vadd.f32 %v373, %v374
        %376 = vadd.xlane.f32.xlu0 %v375
        %v377 = vpop.xlane.xlu0 %376
        %v378 = vrot.slane %v377, 4
        %v379 = vadd.f32 %v377, %v378
        %v380 = vrot.slane %v379, 2
        %v381 = vadd.f32 %v379, %v380
        %v382 = vrot.slane %v381, 1
        %v383 = vadd.f32 %v381, %v382
        %s384 = vtos %v383
        %v385 = vsel %vm341, 1, 0
        %v386 = vcvt.s32.f32 %v385
        %v388 = vlaneseq
        %v389 = vshrl.u32 %v388, 7
        %v390 = vsub.s32 0, %v389
        %v391 = vrot.slane %v386, %v390
        %v392 = vlaneseq
        %v393 = vshrl.u32 %v392, 7
        %v394 = vsub.s32 1, %v393
        %v395 = vrot.slane %v386, %v394
        %v398 = vsel %vm372, %v391, 0.0
        %v399 = vsel %vm372, %v395, 0.0
        %v400 = vadd.f32 %v398, %v399
        %401 = vadd.xlane.f32.xlu0 %v400
        %v402 = vpop.xlane.xlu0 %401
        %v403 = vrot.slane %v402, 4
        %v404 = vadd.f32 %v402, %v403
        %v405 = vrot.slane %v404, 2
        %v406 = vadd.f32 %v404, %v405
        %v407 = vrot.slane %v406, 1
        %v408 = vadd.f32 %v406, %v407
        %s409 = vtos %v408
        %v410 = vstv %s384
        %411 = vst [vmem:[%s251] sm:$0x1] %v410
        %v412 = vstv %s409
        %413 = vst [vmem:[%s257] sm:$0x1] %v412
        %s414 = sand.u32 %s105, 1
        %s415 = scalar_lea.sflag [#allocation4], %s414
        %s416 = sand.u32 %s105, 1
        %s417 = scalar_lea.vmem [#allocation7], %s416
        %s418 = sand.u32 %s133, 1
        %s419 = scalar_lea.sflag [#allocation9], %s418
        %s420 = sand.u32 %s133, 1
        %s421 = scalar_lea.vmem [#allocation8], %s420
        // Predicated region
        $region37: #{tpu_custom_call.1} parent=27 // pred_check
          %p422 = pneg %p115
        $region38: #{tpu_custom_call.1} parent=27 // pred_check_branch
          %424 = sbr.rel (%p422) target = $region40
        $region39: #{tpu_custom_call.1} parent=27 // pred_region
          %s426 = ssub.s32 16, 16
          %427 = vsyncadd %s415, %s426
          %s428 = sadd.s32 %s32, %s31
          %s429 = smul.addr %s428, 16
          %s430 = scalar_lea.hbm %s2, %s429
          %s432 = sshll.u32 %s417, 4
          %s433 = int_to_ptr.vmem [resolvable:$true] %s432
          %435 = dma.vmem_to_hbm [thread:$0]  %s433, 16, %s430, %s415
        $region40: #{tpu_custom_call.1} parent=27 // pred_fallthru
          _
        // Predicated region
        $region41: #{tpu_custom_call.1} parent=27 // pred_check
          %p436 = pneg %p143
        $region42: #{tpu_custom_call.1} parent=27 // pred_check_branch
          %438 = sbr.rel (%p436) target = $region44
        $region43: #{tpu_custom_call.1} parent=27 // pred_region
          %s440 = ssub.s32 16, 16
          %441 = vsyncadd %s419, %s440
          %s442 = sadd.s32 %s32, %s31
          %s443 = smul.addr %s442, 16
          %s444 = scalar_lea.hbm %s3, %s443
          %s446 = sshll.u32 %s421, 4
          %s447 = int_to_ptr.vmem [resolvable:$true] %s446
          %449 = dma.vmem_to_hbm [thread:$0]  %s447, 16, %s444, %s419
        $region44: #{tpu_custom_call.1} parent=27 // pred_fallthru
          _
      $region28: #{tpu_custom_call.1} parent=5 // pred_fallthru
        _
      %p450 = scmp.le.s32.totalorder 2, %s22
      // Predicated region
      $region45: #{tpu_custom_call.1} parent=5 // pred_check
        %p451 = pneg %p450
      $region46: #{tpu_custom_call.1} parent=5 // pred_check_branch
        %453 = sbr.rel (%p451) target = $region48
      $region47: #{tpu_custom_call.1} parent=5 // pred_region
        %s454 = ssub.s32 %s22, 2
        // Predicated region
        $region49: #{tpu_custom_call.1} parent=47 // pred_check
          %p455 = pneg %p121
        $region50: #{tpu_custom_call.1} parent=47 // pred_check_branch
          %457 = sbr.rel (%p455) target = $region52
        $region51: #{tpu_custom_call.1} parent=47 // pred_region
          %s458 = sand.u32 %s106, 1
          %s459 = scalar_lea.sflag [#allocation4], %s458
          %s460 = sand.u32 %s106, 1
          %s461 = scalar_lea.vmem [#allocation7], %s460
          %462 = dma.done %s459, 16
        $region52: #{tpu_custom_call.1} parent=47 // pred_fallthru
          _
        // Predicated region
        $region53: #{tpu_custom_call.1} parent=47 // pred_check
          %p463 = pneg %p149
        $region54: #{tpu_custom_call.1} parent=47 // pred_check_branch
          %465 = sbr.rel (%p463) target = $region56
        $region55: #{tpu_custom_call.1} parent=47 // pred_region
          %s466 = sand.u32 %s134, 1
          %s467 = scalar_lea.sflag [#allocation9], %s466
          %s468 = sand.u32 %s134, 1
          %s469 = scalar_lea.vmem [#allocation8], %s468
          %470 = dma.done %s467, 16
        $region56: #{tpu_custom_call.1} parent=47 // pred_fallthru
          _
      $region48: #{tpu_custom_call.1} parent=5 // pred_fallthru
        _
    $region6: #{tpu_custom_call.1} parent=1 // loop_footer
      %s26 = sadd.s32 1, %s22
    $region7: #{tpu_custom_call.1} parent=1 // loop_footer_branch
      %21 = sbr.rel target = $region3
    $region8: #{tpu_custom_call.1} parent=1 // loop_exit
      _
    %471 = vsyncpa [#allocation3], 1
    %s472 = scalar_lea.sflag [#allocation3], 1
    %473 = vsyncpa %s472, 1
    %474 = vsyncpa [#allocation6], 1
    %s475 = scalar_lea.sflag [#allocation6], 1
    %476 = vsyncpa %s475, 1
    %477 = vsyncpa [#allocation4], 1
    %s478 = scalar_lea.sflag [#allocation4], 1
    %479 = vsyncpa %s478, 1
    %480 = vsyncpa [#allocation9], 1
    %s481 = scalar_lea.sflag [#allocation9], 1
    %482 = vsyncpa %s481, 1

</llo_original>
